<compile_context>
chip_gen: v7x
topology: tpu7x:2x2x1
jax: 0.10.0
libtpu: 0.0.40
codegen_flags: <defaults>
</compile_context>

<pallas_src>
import numpy as np
import jax
import jax.numpy as jnp
from jax.experimental import pallas as pl
from jax.experimental.pallas import tpu as pltpu


def lstm_kernel(x_ref, wx_ref, b_ref, uh_ref, wout_ref, o_ref):
    n_blk, d_r, four_dr = uh_ref.shape          # (B, D_r, 4*D_r)
    batch = x_ref.shape[0]

    # One large matmul for the loop-invariant input projections of ALL blocks,
    # with the per-block biases folded in.                  (batch, B*4*D_r)
    zx = (jnp.dot(x_ref[...], wx_ref[...], preferred_element_type=jnp.float32)
          + b_ref[...])

    h = jnp.zeros((batch, d_r), jnp.float32)
    c = jnp.zeros((batch, d_r), jnp.float32)

    # Statically unrolled recurrence over the B Forget_Blocks (the h/c carry is
    # inherently serial, and B is small, so a Python-unrolled loop is ideal).
    for blk in range(n_blk):
        z = (zx[:, blk * four_dr:(blk + 1) * four_dr]
             + jnp.dot(h, uh_ref[blk], preferred_element_type=jnp.float32))
        t = jnp.tanh(z)                          # single EUP pass, lane-dense
        f = t[:, 0 * d_r:1 * d_r]
        g = t[:, 1 * d_r:2 * d_r]
        r = t[:, 2 * d_r:3 * d_r]
        s = t[:, 3 * d_r:4 * d_r]
        c = f * c + g * s
        h = r * jnp.tanh(c)

    # Final output projection W: (D_r -> D), no bias.
    o_ref[...] = jnp.dot(h, wout_ref[...],
                         preferred_element_type=jnp.float32).astype(o_ref.dtype)


def lstm_forward(x, wx_all, uh_all, b_all, w_out):
    """x: (batch, D); wx_all: (B, D, 4*D_r); uh_all: (B, D_r, 4*D_r);
    b_all: (B, 1, 4*D_r); w_out: (D_r, D).  Returns (batch, D)."""
    n_blocks, D, four_dr = wx_all.shape
    d_r = four_dr // 4
    batch = x.shape[0]

    # Concatenate per-block x-projection weights / biases along the output axis
    # so the kernel can hoist them into one (batch,D) x (D, B*4*D_r) matmul.
    wx_cat = jnp.transpose(wx_all, (1, 0, 2)).reshape(D, n_blocks * four_dr)
    b_cat = b_all.reshape(1, n_blocks * four_dr)

    return pl.pallas_call(
        lstm_kernel,
        out_shape=jax.ShapeDtypeStruct((batch, D), jnp.float32),
        grid_spec=pltpu.PrefetchScalarGridSpec(
            num_scalar_prefetch=0,
            grid=(1,),                                   # single, fully VMEM-resident step
            in_specs=[
                pl.BlockSpec((batch, D), lambda i: (0, 0)),                    # x
                pl.BlockSpec((D, n_blocks * four_dr), lambda i: (0, 0)),       # W_cat
                pl.BlockSpec((1, n_blocks * four_dr), lambda i: (0, 0)),       # bias_cat
                pl.BlockSpec((n_blocks, d_r, four_dr), lambda i: (0, 0, 0)),   # U stack
                pl.BlockSpec((d_r, D), lambda i: (0, 0)),                      # final W
            ],
            out_specs=pl.BlockSpec((batch, D), lambda i: (0, 0)),
        ),
        compiler_params=pltpu.CompilerParams(
            dimension_semantics=("arbitrary",)),
    )(x, wx_cat, b_cat, uh_all, w_out)


def lstm_ref(x, wx_all, uh_all, b_all, w_out):
    """Pure-JAX reference mirroring the PyTorch forward."""
    batch = x.shape[0]
    d_r = w_out.shape[0]
    h = jnp.zeros((batch, d_r), jnp.float32)
    c = jnp.zeros((batch, d_r), jnp.float32)
    for i in range(wx_all.shape[0]):
        z = x @ wx_all[i] + h @ uh_all[i] + b_all[i]
        f, g, r, s = jnp.split(jnp.tanh(z), 4, axis=-1)
        c = f * c + g * s
        h = r * jnp.tanh(c)
    return h @ w_out


if __name__ == "__main__":
    # Module hyper-params: D (input dim), D_r (hidden dim), B (num blocks)
    D, D_r, B = 16, 32, 4
    batch = 8

    key = jax.random.PRNGKey(0)
    k_x, k_wx, k_uh, k_b, k_wo = jax.random.split(key, 5)

    # Deterministic synthetic parameters (PyTorch-Linear shapes, pre-transposed
    # to (in, out); uniform(-1/sqrt(in), 1/sqrt(in)) like nn.Linear defaults).
    x = jax.random.normal(k_x, (batch, D), jnp.float32)
    wx_all = jax.random.uniform(k_wx, (B, D, 4 * D_r), jnp.float32,
                                minval=-1.0 / np.sqrt(D), maxval=1.0 / np.sqrt(D))
    uh_all = jax.random.uniform(k_uh, (B, D_r, 4 * D_r), jnp.float32,
                                minval=-1.0 / np.sqrt(D_r), maxval=1.0 / np.sqrt(D_r))
    b_all = jax.random.uniform(k_b, (B, 1, 4 * D_r), jnp.float32,
                               minval=-1.0 / np.sqrt(D), maxval=1.0 / np.sqrt(D))
    w_out = jax.random.uniform(k_wo, (D_r, D), jnp.float32,
                               minval=-1.0 / np.sqrt(D_r), maxval=1.0 / np.sqrt(D_r))

    out = lstm_forward(x, wx_all, uh_all, b_all, w_out)
    out = jax.block_until_ready(out)

    ref = lstm_ref(x, wx_all, uh_all, b_all, w_out)
    np.testing.assert_allclose(np.asarray(out), np.asarray(ref),
                               rtol=1e-5, atol=1e-5)
    print("KERNEL_OK")
</pallas_src>

<mosaic_0001>
module attributes {stable_mosaic.version = 11 : i64} {
  func.func @lstm_kernel(%arg0: i32, %arg1: memref<8x16xf32, #tpu.memory_space<vmem>>, %arg2: memref<16x512xf32, #tpu.memory_space<vmem>>, %arg3: memref<1x512xf32, #tpu.memory_space<vmem>>, %arg4: memref<4x32x128xf32, #tpu.memory_space<vmem>>, %arg5: memref<32x16xf32, #tpu.memory_space<vmem>>, %arg6: memref<8x16xf32, #tpu.memory_space<vmem>>) attributes {dimension_semantics = [#tpu.dimension_semantics<arbitrary>], iteration_bounds = array<i64: 1>, scalar_prefetch = 0 : i64, scratch_operands = 0 : i64, tpu.core_type = #tpu.core_type<tc>, window_params = [{pipeline_mode = #tpu.pipeline_mode<synchronous>, transform_indices = @transform_0, window_bounds = array<i64: 8, 16>}, {pipeline_mode = #tpu.pipeline_mode<synchronous>, transform_indices = @transform_1, window_bounds = array<i64: 16, 512>}, {pipeline_mode = #tpu.pipeline_mode<synchronous>, transform_indices = @transform_2, window_bounds = array<i64: 1, 512>}, {pipeline_mode = #tpu.pipeline_mode<synchronous>, transform_indices = @transform_3, window_bounds = array<i64: 4, 32, 128>}, {pipeline_mode = #tpu.pipeline_mode<synchronous>, transform_indices = @transform_4, window_bounds = array<i64: 32, 16>}, {pipeline_mode = #tpu.pipeline_mode<synchronous>, transform_indices = @transform_5, window_bounds = array<i64: 8, 16>}]} {
    %c0 = arith.constant 0 : index
    %c0_0 = arith.constant 0 : index
    %0 = vector.load %arg1[%c0, %c0_0] : memref<8x16xf32, #tpu.memory_space<vmem>>, vector<8x16xf32>
    %c0_1 = arith.constant 0 : index
    %c0_2 = arith.constant 0 : index
    %1 = vector.load %arg2[%c0_1, %c0_2] : memref<16x512xf32, #tpu.memory_space<vmem>>, vector<16x512xf32>
    %cst = arith.constant dense<0.000000e+00> : vector<8x512xf32>
    %2 = tpu.matmul %0, %1, %cst {dimension_numbers = #tpu.dot_dimension_numbers<[1], [0], [0], [1], [0, 0, 1, 1], [], []>} : vector<8x16xf32>, vector<16x512xf32>, vector<8x512xf32> -> vector<8x512xf32>
    %c0_3 = arith.constant 0 : index
    %c0_4 = arith.constant 0 : index
    %3 = vector.load %arg3[%c0_3, %c0_4] : memref<1x512xf32, #tpu.memory_space<vmem>>, vector<1x512xf32>
    %4 = vector.broadcast %3 : vector<1x512xf32> to vector<8x512xf32>
    %5 = arith.addf %2, %4 : vector<8x512xf32>
    %cst_5 = arith.constant 0.000000e+00 : f32
    %6 = vector.broadcast %cst_5 : f32 to vector<8x32xf32>
    %cst_6 = arith.constant 0.000000e+00 : f32
    %7 = vector.broadcast %cst_6 : f32 to vector<8x32xf32>
    %8 = vector.extract_strided_slice %5 {offsets = [0, 0], sizes = [8, 128], strides = [1, 1]} : vector<8x512xf32> to vector<8x128xf32>
    %c0_7 = arith.constant 0 : index
    %c0_8 = arith.constant 0 : index
    %c0_9 = arith.constant 0 : index
    %9 = vector.load %arg4[%c0_7, %c0_8, %c0_9] : memref<4x32x128xf32, #tpu.memory_space<vmem>>, vector<1x32x128xf32>
    %10 = vector.shape_cast %9 : vector<1x32x128xf32> to vector<32x128xf32>
    %cst_10 = arith.constant dense<0.000000e+00> : vector<8x128xf32>
    %11 = tpu.matmul %6, %10, %cst_10 {dimension_numbers = #tpu.dot_dimension_numbers<[1], [0], [0], [1], [0, 0, 1, 1], [], []>} : vector<8x32xf32>, vector<32x128xf32>, vector<8x128xf32> -> vector<8x128xf32>
    %12 = arith.addf %8, %11 : vector<8x128xf32>
    %13 = math.tanh %12 : vector<8x128xf32>
    %14 = vector.extract_strided_slice %13 {offsets = [0, 0], sizes = [8, 32], strides = [1, 1]} : vector<8x128xf32> to vector<8x32xf32>
    %15 = vector.extract_strided_slice %13 {offsets = [0, 32], sizes = [8, 32], strides = [1, 1]} : vector<8x128xf32> to vector<8x32xf32>
    %16 = vector.extract_strided_slice %13 {offsets = [0, 64], sizes = [8, 32], strides = [1, 1]} : vector<8x128xf32> to vector<8x32xf32>
    %17 = vector.extract_strided_slice %13 {offsets = [0, 96], sizes = [8, 32], strides = [1, 1]} : vector<8x128xf32> to vector<8x32xf32>
    %18 = arith.mulf %14, %7 : vector<8x32xf32>
    %19 = arith.mulf %15, %17 : vector<8x32xf32>
    %20 = arith.addf %18, %19 : vector<8x32xf32>
    %21 = math.tanh %20 : vector<8x32xf32>
    %22 = arith.mulf %16, %21 : vector<8x32xf32>
    %23 = vector.extract_strided_slice %5 {offsets = [0, 128], sizes = [8, 128], strides = [1, 1]} : vector<8x512xf32> to vector<8x128xf32>
    %c1 = arith.constant 1 : index
    %c0_11 = arith.constant 0 : index
    %c0_12 = arith.constant 0 : index
    %24 = vector.load %arg4[%c1, %c0_11, %c0_12] : memref<4x32x128xf32, #tpu.memory_space<vmem>>, vector<1x32x128xf32>
    %25 = vector.shape_cast %24 : vector<1x32x128xf32> to vector<32x128xf32>
    %cst_13 = arith.constant dense<0.000000e+00> : vector<8x128xf32>
    %26 = tpu.matmul %22, %25, %cst_13 {dimension_numbers = #tpu.dot_dimension_numbers<[1], [0], [0], [1], [0, 0, 1, 1], [], []>} : vector<8x32xf32>, vector<32x128xf32>, vector<8x128xf32> -> vector<8x128xf32>
    %27 = arith.addf %23, %26 : vector<8x128xf32>
    %28 = math.tanh %27 : vector<8x128xf32>
    %29 = vector.extract_strided_slice %28 {offsets = [0, 0], sizes = [8, 32], strides = [1, 1]} : vector<8x128xf32> to vector<8x32xf32>
    %30 = vector.extract_strided_slice %28 {offsets = [0, 32], sizes = [8, 32], strides = [1, 1]} : vector<8x128xf32> to vector<8x32xf32>
    %31 = vector.extract_strided_slice %28 {offsets = [0, 64], sizes = [8, 32], strides = [1, 1]} : vector<8x128xf32> to vector<8x32xf32>
    %32 = vector.extract_strided_slice %28 {offsets = [0, 96], sizes = [8, 32], strides = [1, 1]} : vector<8x128xf32> to vector<8x32xf32>
    %33 = arith.mulf %29, %20 : vector<8x32xf32>
    %34 = arith.mulf %30, %32 : vector<8x32xf32>
    %35 = arith.addf %33, %34 : vector<8x32xf32>
    %36 = math.tanh %35 : vector<8x32xf32>
    %37 = arith.mulf %31, %36 : vector<8x32xf32>
    %38 = vector.extract_strided_slice %5 {offsets = [0, 256], sizes = [8, 128], strides = [1, 1]} : vector<8x512xf32> to vector<8x128xf32>
    %c2 = arith.constant 2 : index
    %c0_14 = arith.constant 0 : index
    %c0_15 = arith.constant 0 : index
    %39 = vector.load %arg4[%c2, %c0_14, %c0_15] : memref<4x32x128xf32, #tpu.memory_space<vmem>>, vector<1x32x128xf32>
    %40 = vector.shape_cast %39 : vector<1x32x128xf32> to vector<32x128xf32>
    %cst_16 = arith.constant dense<0.000000e+00> : vector<8x128xf32>
    %41 = tpu.matmul %37, %40, %cst_16 {dimension_numbers = #tpu.dot_dimension_numbers<[1], [0], [0], [1], [0, 0, 1, 1], [], []>} : vector<8x32xf32>, vector<32x128xf32>, vector<8x128xf32> -> vector<8x128xf32>
    %42 = arith.addf %38, %41 : vector<8x128xf32>
    %43 = math.tanh %42 : vector<8x128xf32>
    %44 = vector.extract_strided_slice %43 {offsets = [0, 0], sizes = [8, 32], strides = [1, 1]} : vector<8x128xf32> to vector<8x32xf32>
    %45 = vector.extract_strided_slice %43 {offsets = [0, 32], sizes = [8, 32], strides = [1, 1]} : vector<8x128xf32> to vector<8x32xf32>
    %46 = vector.extract_strided_slice %43 {offsets = [0, 64], sizes = [8, 32], strides = [1, 1]} : vector<8x128xf32> to vector<8x32xf32>
    %47 = vector.extract_strided_slice %43 {offsets = [0, 96], sizes = [8, 32], strides = [1, 1]} : vector<8x128xf32> to vector<8x32xf32>
    %48 = arith.mulf %44, %35 : vector<8x32xf32>
    %49 = arith.mulf %45, %47 : vector<8x32xf32>
    %50 = arith.addf %48, %49 : vector<8x32xf32>
    %51 = math.tanh %50 : vector<8x32xf32>
    %52 = arith.mulf %46, %51 : vector<8x32xf32>
    %53 = vector.extract_strided_slice %5 {offsets = [0, 384], sizes = [8, 128], strides = [1, 1]} : vector<8x512xf32> to vector<8x128xf32>
    %c3 = arith.constant 3 : index
    %c0_17 = arith.constant 0 : index
    %c0_18 = arith.constant 0 : index
    %54 = vector.load %arg4[%c3, %c0_17, %c0_18] : memref<4x32x128xf32, #tpu.memory_space<vmem>>, vector<1x32x128xf32>
    %55 = vector.shape_cast %54 : vector<1x32x128xf32> to vector<32x128xf32>
    %cst_19 = arith.constant dense<0.000000e+00> : vector<8x128xf32>
    %56 = tpu.matmul %52, %55, %cst_19 {dimension_numbers = #tpu.dot_dimension_numbers<[1], [0], [0], [1], [0, 0, 1, 1], [], []>} : vector<8x32xf32>, vector<32x128xf32>, vector<8x128xf32> -> vector<8x128xf32>
    %57 = arith.addf %53, %56 : vector<8x128xf32>
    %58 = math.tanh %57 : vector<8x128xf32>
    %59 = vector.extract_strided_slice %58 {offsets = [0, 0], sizes = [8, 32], strides = [1, 1]} : vector<8x128xf32> to vector<8x32xf32>
    %60 = vector.extract_strided_slice %58 {offsets = [0, 32], sizes = [8, 32], strides = [1, 1]} : vector<8x128xf32> to vector<8x32xf32>
    %61 = vector.extract_strided_slice %58 {offsets = [0, 64], sizes = [8, 32], strides = [1, 1]} : vector<8x128xf32> to vector<8x32xf32>
    %62 = vector.extract_strided_slice %58 {offsets = [0, 96], sizes = [8, 32], strides = [1, 1]} : vector<8x128xf32> to vector<8x32xf32>
    %63 = arith.mulf %59, %50 : vector<8x32xf32>
    %64 = arith.mulf %60, %62 : vector<8x32xf32>
    %65 = arith.addf %63, %64 : vector<8x32xf32>
    %66 = math.tanh %65 : vector<8x32xf32>
    %67 = arith.mulf %61, %66 : vector<8x32xf32>
    %c0_20 = arith.constant 0 : index
    %c0_21 = arith.constant 0 : index
    %68 = vector.load %arg5[%c0_20, %c0_21] : memref<32x16xf32, #tpu.memory_space<vmem>>, vector<32x16xf32>
    %cst_22 = arith.constant dense<0.000000e+00> : vector<8x16xf32>
    %69 = tpu.matmul %67, %68, %cst_22 {dimension_numbers = #tpu.dot_dimension_numbers<[1], [0], [0], [1], [0, 0, 1, 1], [], []>} : vector<8x32xf32>, vector<32x16xf32>, vector<8x16xf32> -> vector<8x16xf32>
    %c0_23 = arith.constant 0 : index
    %c0_24 = arith.constant 0 : index
    %70 = vector.load %arg6[%c0_23, %c0_24] : memref<8x16xf32, #tpu.memory_space<vmem>>, vector<8x16xf32>
    tpu.vector_store %arg6[%c0_23, %c0_24], %69 {strides = array<i32>} : memref<8x16xf32, #tpu.memory_space<vmem>>, vector<8x16xf32>,
    return
  }
  func.func @transform_0(%arg0: i32) -> (i32, i32) {
    %c0_i32 = arith.constant 0 : i32
    %c0_i32_0 = arith.constant 0 : i32
    %c0_i32_1 = arith.constant 0 : i32
    return %c0_i32, %c0_i32_0 : i32, i32
  }
  func.func @transform_1(%arg0: i32) -> (i32, i32) {
    %c0_i32 = arith.constant 0 : i32
    %c0_i32_0 = arith.constant 0 : i32
    %c0_i32_1 = arith.constant 0 : i32
    return %c0_i32, %c0_i32_0 : i32, i32
  }
  func.func @transform_2(%arg0: i32) -> (i32, i32) {
    %c0_i32 = arith.constant 0 : i32
    %c0_i32_0 = arith.constant 0 : i32
    %c0_i32_1 = arith.constant 0 : i32
    return %c0_i32, %c0_i32_0 : i32, i32
  }
  func.func @transform_3(%arg0: i32) -> (i32, i32, i32) {
    %c0_i32 = arith.constant 0 : i32
    %c0_i32_0 = arith.constant 0 : i32
    %c0_i32_1 = arith.constant 0 : i32
    %c0_i32_2 = arith.constant 0 : i32
    return %c0_i32, %c0_i32_0, %c0_i32_1 : i32, i32, i32
  }
  func.func @transform_4(%arg0: i32) -> (i32, i32) {
    %c0_i32 = arith.constant 0 : i32
    %c0_i32_0 = arith.constant 0 : i32
    %c0_i32_1 = arith.constant 0 : i32
    return %c0_i32, %c0_i32_0 : i32, i32
  }
  func.func @transform_5(%arg0: i32) -> (i32, i32) {
    %c0_i32 = arith.constant 0 : i32
    %c0_i32_0 = arith.constant 0 : i32
    %c0_i32_1 = arith.constant 0 : i32
    return %c0_i32, %c0_i32_0 : i32, i32
  }
}

</mosaic_0001>

<llo_original>
// kernel: tpu_custom_call.1
$region0: #{tpu_custom_call.1}
  #allocation0 [shape = 'u32[]', space=smem, size = 0x4, offset = 0x4, fixed_abs, tag = 'smem constant byte address 0x4 - core index']
  #allocation1 [shape = 'u32[144,128]{1,0:T(1,128)}', space=vmem, size = 0x12000, scoped, tag = 'internal scratch']
  %s0 = inlined_call_operand.vmem [shape: f32[8,16], index: 0, kind: input, shape index: {}]
  %s1 = inlined_call_operand.hbm [shape: f32[16,512], index: 1, kind: input, shape index: {}]
  %s2 = inlined_call_operand.vmem [shape: f32[1,512], index: 2, kind: input, shape index: {}]
  %s3 = inlined_call_operand.hbm [shape: f32[4,32,128], index: 3, kind: input, shape index: {}]
  %s4 = inlined_call_operand.vmem [shape: f32[32,16], index: 4, kind: input, shape index: {}]
  %s5 = inlined_call_operand.hbm [shape: f32[8,16], index: 5, kind: output, shape index: {}]
  %s6 = sld [smem:[#allocation0]]
  $region38: #{tpu_custom_call.1} parent=0
    _
  %s8 = ssub.s32 1, %s6
  %s9 = scalar_select 0, %s8, %s6
  $region1: #{tpu_custom_call.1} parent=0
    #allocation2 [shape = 'u8[32768]{0}', space=vmem, size = 0x8000, scoped, tag = 'input window, operand 1, single buffered']
    #allocation3 [shape = 's32[1]{0}', space=sflag, size = 0x4, scoped, tag = 'scoped memory for tpu_custom_call.1']
    #allocation4 [shape = 's32[1]{0}', space=sflag, size = 0x4, scoped, tag = 'scoped memory for tpu_custom_call.1']
    #allocation5 [shape = 'u8[65536]{0}', space=vmem, size = 0x10000, scoped, tag = 'input window, operand 3, single buffered']
    #allocation6 [shape = 's32[1]{0}', space=sflag, size = 0x4, scoped, tag = 'scoped memory for tpu_custom_call.1']
    #allocation7 [shape = 'u8[4096]{0}', space=vmem, size = 0x1000, scoped, tag = 'output window, operand 0, single buffered']
    %10 = vsyncpa [#allocation3], 0
    %11 = vsyncpa [#allocation6], 0
    %12 = vsyncpa [#allocation4], 0
    // Predicated region
    $region2: #{tpu_custom_call.1} parent=1 // pred_check
      _
    $region3: #{tpu_custom_call.1} parent=1 // pred_check_branch
      %14 = sbr.rel (0) target = $region5
    $region4: #{tpu_custom_call.1} parent=1 // pred_region
      _
    $region5: #{tpu_custom_call.1} parent=1 // pred_fallthru
      _
    // Predicated region
    $region6: #{tpu_custom_call.1} parent=1 // pred_check
      _
    $region7: #{tpu_custom_call.1} parent=1 // pred_check_branch
      %16 = sbr.rel (0) target = $region9
    $region8: #{tpu_custom_call.1} parent=1 // pred_region
      %s18 = ssub.s32 1024, 1024
      %19 = vsyncadd [#allocation3], %s18
      %s20 = sshll.u32 [#allocation2], 4
      %s21 = int_to_ptr.vmem [resolvable:$true] %s20
      %26 = dma.hbm_to_vmem [thread:$0]  %s1, 1024, %s21, [#allocation3], 512, 512, 32
    $region9: #{tpu_custom_call.1} parent=1 // pred_fallthru
      _
    // Predicated region
    $region10: #{tpu_custom_call.1} parent=1 // pred_check
      _
    $region11: #{tpu_custom_call.1} parent=1 // pred_check_branch
      %28 = sbr.rel (0) target = $region13
    $region12: #{tpu_custom_call.1} parent=1 // pred_region
      _
    $region13: #{tpu_custom_call.1} parent=1 // pred_fallthru
      _
    // Predicated region
    $region14: #{tpu_custom_call.1} parent=1 // pred_check
      _
    $region15: #{tpu_custom_call.1} parent=1 // pred_check_branch
      %30 = sbr.rel (0) target = $region17
    $region16: #{tpu_custom_call.1} parent=1 // pred_region
      %s32 = ssub.s32 2048, 2048
      %33 = vsyncadd [#allocation6], %s32
      %s34 = sshll.u32 [#allocation5], 4
      %s35 = int_to_ptr.vmem [resolvable:$true] %s34
      %40 = dma.hbm_to_vmem [thread:$0]  %s3, 2048, %s35, [#allocation6], 128, 128, 8
    $region17: #{tpu_custom_call.1} parent=1 // pred_fallthru
      _
    // Predicated region
    $region18: #{tpu_custom_call.1} parent=1 // pred_check
      _
    $region19: #{tpu_custom_call.1} parent=1 // pred_check_branch
      %42 = sbr.rel (0) target = $region21
    $region20: #{tpu_custom_call.1} parent=1 // pred_region
      _
    $region21: #{tpu_custom_call.1} parent=1 // pred_fallthru
      _
    // Predicated region
    $region22: #{tpu_custom_call.1} parent=1 // pred_check
      _
    $region23: #{tpu_custom_call.1} parent=1 // pred_check_branch
      %44 = sbr.rel (0) target = $region25
    $region24: #{tpu_custom_call.1} parent=1 // pred_region
      %45 = dma.done [#allocation3], 1024
    $region25: #{tpu_custom_call.1} parent=1 // pred_fallthru
      _
    // Predicated region
    $region26: #{tpu_custom_call.1} parent=1 // pred_check
      _
    $region27: #{tpu_custom_call.1} parent=1 // pred_check_branch
      %47 = sbr.rel (0) target = $region29
    $region28: #{tpu_custom_call.1} parent=1 // pred_region
      %48 = dma.done [#allocation6], 2048
    $region29: #{tpu_custom_call.1} parent=1 // pred_fallthru
      _
    %v49 = vld [vmem:[%s0] sm:$0xff]
    %v50 = vld [vmem:[#allocation2] sm:$0xff]
    %v51 = vld [vmem:[#allocation2 + $0x8] sm:$0xff]
    %v52 = vld [vmem:[#allocation2 + $0x10] sm:$0xff]
    %v53 = vld [vmem:[#allocation2 + $0x18] sm:$0xff]
    %v54 = vld [vmem:[#allocation2 + $0x20] sm:$0xff]
    %v55 = vld [vmem:[#allocation2 + $0x28] sm:$0xff]
    %v56 = vld [vmem:[#allocation2 + $0x30] sm:$0xff]
    %v57 = vld [vmem:[#allocation2 + $0x38] sm:$0xff]
    %v58 = vld [vmem:[%s2] sm:$0xf]
    %v60 = vlaneseq
    %v61 = vshrl.u32 %v60, 7
    %v62 = vsub.s32 0, %v61
    %v63 = vrot.slane %v58, %v62
    %v64 = vlaneseq
    %v65 = vshrl.u32 %v64, 7
    %v66 = vsub.s32 1, %v65
    %v67 = vrot.slane %v58, %v66
    %v68 = vlaneseq
    %v69 = vshrl.u32 %v68, 7
    %v70 = vsub.s32 2, %v69
    %v71 = vrot.slane %v58, %v70
    %v72 = vlaneseq
    %v73 = vshrl.u32 %v72, 7
    %v74 = vsub.s32 3, %v73
    %v75 = vrot.slane %v58, %v74
    %vm80 = vcmask 130048
    %v82 = vsel %vm80, %v49, 0
    %84 = vmatprep.subr.mxu0 %v51
    %85 = vmatpush1.msra.mxu0 %v50
    %86 = vmatprep.subr.mxu0 %v55
    %87 = vmatpush1.msra.mxu0 %v54
    %88 = vmatprep.subr.mxu0 0.0
    %89 = vmatpush1.msra.mxu0 0.0
    %90 = vmatprep.subr.mxu0 0.0
    %91 = vmatpush1.msra.mxu0 0.0
    %92 = vmatprep.subr.mxu0 0.0
    %93 = vmatpush1.msra.mxu0 0.0
    %94 = vmatprep.subr.mxu0 0.0
    %95 = vmatpush1.msra.mxu0 0.0
    %96 = vmatprep.subr.mxu0 0.0
    %97 = vmatpush1.msra.mxu0 0.0
    %98 = vmatprep.subr.mxu0 0.0
    %99 = vmatpush1.msra.mxu0 0.0
    %100 = vmatprep.subr.mxu0 0.0
    %101 = vmatpush1.msra.mxu0 0.0
    %102 = vmatprep.subr.mxu0 0.0
    %103 = vmatpush1.msra.mxu0 0.0
    %104 = vmatprep.subr.mxu0 0.0
    %105 = vmatpush1.msra.mxu0 0.0
    %106 = vmatprep.subr.mxu0 0.0
    %107 = vmatpush1.msra.mxu0 0.0
    %108 = vmatprep.subr.mxu0 0.0
    %109 = vmatpush1.msra.mxu0 0.0
    %110 = vmatprep.subr.mxu0 0.0
    %111 = vmatpush1.msra.mxu0 0.0
    %112 = vmatprep.subr.mxu0 0.0
    %113 = vmatpush1.msra.mxu0 0.0
    %114 = vmatprep.subr.mxu0 0.0
    %115 = vmatpush1.msra.mxu0 0.0
    %116 = vmatprep.subr.mxu0 0.0
    %117 = vmatpush1.msra.mxu0 0.0
    %118 = vmatprep.subr.mxu0 0.0
    %119 = vmatpush1.msra.mxu0 0.0
    %120 = vmatprep.subr.mxu0 0.0
    %121 = vmatpush1.msra.mxu0 0.0
    %122 = vmatprep.subr.mxu0 0.0
    %123 = vmatpush1.msra.mxu0 0.0
    %124 = vmatprep.subr.mxu0 0.0
    %125 = vmatpush1.msra.mxu0 0.0
    %126 = vmatprep.subr.mxu0 0.0
    %127 = vmatpush1.msra.mxu0 0.0
    %128 = vmatprep.subr.mxu0 0.0
    %129 = vmatpush1.msra.mxu0 0.0
    %130 = vmatprep.subr.mxu0 0.0
    %131 = vmatpush1.msra.mxu0 0.0
    %132 = vmatprep.subr.mxu0 0.0
    %133 = vmatpush1.msra.mxu0 0.0
    %134 = vmatprep.subr.mxu0 0.0
    %135 = vmatpush1.msra.mxu0 0.0
    %136 = vmatprep.subr.mxu0 0.0
    %137 = vmatpush1.msra.mxu0 0.0
    %138 = vmatprep.subr.mxu0 0.0
    %139 = vmatpush1.msra.mxu0 0.0
    %140 = vmatprep.subr.mxu0 0.0
    %141 = vmatpush1.msra.mxu0 0.0
    %142 = vmatprep.subr.mxu0 0.0
    %143 = vmatpush1.msra.mxu0 0.0
    %144 = vmatprep.subr.mxu0 0.0
    %145 = vmatpush1.msra.mxu0 0.0
    %146 = vmatprep.subr.mxu0 0.0
    %147 = vmatpush1.msra.mxu0 0.0
    %148 = vmatprep.mubr.f32.mxu0 0.0
    %149 = vmatmul.mubr.f32.gmra.mrb[0].mxu0 %v82
    %v150 = vpop.f32.mrb[0].mxu0
    %v151 = vadd.f32 %v63, %v150
    %v152 = vpop.f32.mrb[0].mxu0
    %v153 = vadd.f32 %v67, %v152
    %154 = vdwg.mxu0
    %155 = vmatprep.subr.mxu0 %v53
    %156 = vmatpush1.msra.mxu0 %v52
    %157 = vmatprep.subr.mxu0 %v57
    %158 = vmatpush1.msra.mxu0 %v56
    %159 = vmatprep.subr.mxu0 0.0
    %160 = vmatpush1.msra.mxu0 0.0
    %161 = vmatprep.subr.mxu0 0.0
    %162 = vmatpush1.msra.mxu0 0.0
    %163 = vmatprep.subr.mxu0 0.0
    %164 = vmatpush1.msra.mxu0 0.0
    %165 = vmatprep.subr.mxu0 0.0
    %166 = vmatpush1.msra.mxu0 0.0
    %167 = vmatprep.subr.mxu0 0.0
    %168 = vmatpush1.msra.mxu0 0.0
    %169 = vmatprep.subr.mxu0 0.0
    %170 = vmatpush1.msra.mxu0 0.0
    %171 = vmatprep.subr.mxu0 0.0
    %172 = vmatpush1.msra.mxu0 0.0
    %173 = vmatprep.subr.mxu0 0.0
    %174 = vmatpush1.msra.mxu0 0.0
    %175 = vmatprep.subr.mxu0 0.0
    %176 = vmatpush1.msra.mxu0 0.0
    %177 = vmatprep.subr.mxu0 0.0
    %178 = vmatpush1.msra.mxu0 0.0
    %179 = vmatprep.subr.mxu0 0.0
    %180 = vmatpush1.msra.mxu0 0.0
    %181 = vmatprep.subr.mxu0 0.0
    %182 = vmatpush1.msra.mxu0 0.0
    %183 = vmatprep.subr.mxu0 0.0
    %184 = vmatpush1.msra.mxu0 0.0
    %185 = vmatprep.subr.mxu0 0.0
    %186 = vmatpush1.msra.mxu0 0.0
    %187 = vmatprep.subr.mxu0 0.0
    %188 = vmatpush1.msra.mxu0 0.0
    %189 = vmatprep.subr.mxu0 0.0
    %190 = vmatpush1.msra.mxu0 0.0
    %191 = vmatprep.subr.mxu0 0.0
    %192 = vmatpush1.msra.mxu0 0.0
    %193 = vmatprep.subr.mxu0 0.0
    %194 = vmatpush1.msra.mxu0 0.0
    %195 = vmatprep.subr.mxu0 0.0
    %196 = vmatpush1.msra.mxu0 0.0
    %197 = vmatprep.subr.mxu0 0.0
    %198 = vmatpush1.msra.mxu0 0.0
    %199 = vmatprep.subr.mxu0 0.0
    %200 = vmatpush1.msra.mxu0 0.0
    %201 = vmatprep.subr.mxu0 0.0
    %202 = vmatpush1.msra.mxu0 0.0
    %203 = vmatprep.subr.mxu0 0.0
    %204 = vmatpush1.msra.mxu0 0.0
    %205 = vmatprep.subr.mxu0 0.0
    %206 = vmatpush1.msra.mxu0 0.0
    %207 = vmatprep.subr.mxu0 0.0
    %208 = vmatpush1.msra.mxu0 0.0
    %209 = vmatprep.subr.mxu0 0.0
    %210 = vmatpush1.msra.mxu0 0.0
    %211 = vmatprep.subr.mxu0 0.0
    %212 = vmatpush1.msra.mxu0 0.0
    %213 = vmatprep.subr.mxu0 0.0
    %214 = vmatpush1.msra.mxu0 0.0
    %215 = vmatprep.subr.mxu0 0.0
    %216 = vmatpush1.msra.mxu0 0.0
    %217 = vmatprep.subr.mxu0 0.0
    %218 = vmatpush1.msra.mxu0 0.0
    %219 = vmatprep.mubr.f32.mxu0 0.0
    %220 = vmatmul.mubr.f32.gmra.mrb[0].mxu0 %v82
    %v221 = vpop.f32.mrb[0].mxu0
    %v222 = vadd.f32 %v71, %v221
    %v223 = vpop.f32.mrb[0].mxu0
    %v224 = vadd.f32 %v75, %v223
    %225 = vdwg.mxu0
    %v226 = vld [vmem:[#allocation5] sm:$0xff]
    %v227 = vld [vmem:[#allocation5 + $0x8] sm:$0xff]
    %v228 = vld [vmem:[#allocation5 + $0x10] sm:$0xff]
    %v229 = vld [vmem:[#allocation5 + $0x18] sm:$0xff]
    %vm230 = vcmask 261120
    %v232 = vsel %vm230, 0.0, 0
    %234 = vmatprep.subr.mxu0 0.0
    %235 = vmatpush1.msra.mxu0 %v226
    %236 = vmatprep.subr.mxu0 0.0
    %237 = vmatpush1.msra.mxu0 %v227
    %238 = vmatprep.subr.mxu0 0.0
    %239 = vmatpush1.msra.mxu0 %v228
    %240 = vmatprep.subr.mxu0 0.0
    %241 = vmatpush1.msra.mxu0 %v229
    %242 = vmatprep.subr.mxu0 0.0
    %243 = vmatpush1.msra.mxu0 0.0
    %244 = vmatprep.subr.mxu0 0.0
    %245 = vmatpush1.msra.mxu0 0.0
    %246 = vmatprep.subr.mxu0 0.0
    %247 = vmatpush1.msra.mxu0 0.0
    %248 = vmatprep.subr.mxu0 0.0
    %249 = vmatpush1.msra.mxu0 0.0
    %250 = vmatprep.subr.mxu0 0.0
    %251 = vmatpush1.msra.mxu0 0.0
    %252 = vmatprep.subr.mxu0 0.0
    %253 = vmatpush1.msra.mxu0 0.0
    %254 = vmatprep.subr.mxu0 0.0
    %255 = vmatpush1.msra.mxu0 0.0
    %256 = vmatprep.subr.mxu0 0.0
    %257 = vmatpush1.msra.mxu0 0.0
    %258 = vmatprep.subr.mxu0 0.0
    %259 = vmatpush1.msra.mxu0 0.0
    %260 = vmatprep.subr.mxu0 0.0
    %261 = vmatpush1.msra.mxu0 0.0
    %262 = vmatprep.subr.mxu0 0.0
    %263 = vmatpush1.msra.mxu0 0.0
    %264 = vmatprep.subr.mxu0 0.0
    %265 = vmatpush1.msra.mxu0 0.0
    %266 = vmatprep.subr.mxu0 0.0
    %267 = vmatpush1.msra.mxu0 0.0
    %268 = vmatprep.subr.mxu0 0.0
    %269 = vmatpush1.msra.mxu0 0.0
    %270 = vmatprep.subr.mxu0 0.0
    %271 = vmatpush1.msra.mxu0 0.0
    %272 = vmatprep.subr.mxu0 0.0
    %273 = vmatpush1.msra.mxu0 0.0
    %274 = vmatprep.subr.mxu0 0.0
    %275 = vmatpush1.msra.mxu0 0.0
    %276 = vmatprep.subr.mxu0 0.0
    %277 = vmatpush1.msra.mxu0 0.0
    %278 = vmatprep.subr.mxu0 0.0
    %279 = vmatpush1.msra.mxu0 0.0
    %280 = vmatprep.subr.mxu0 0.0
    %281 = vmatpush1.msra.mxu0 0.0
    %282 = vmatprep.subr.mxu0 0.0
    %283 = vmatpush1.msra.mxu0 0.0
    %284 = vmatprep.subr.mxu0 0.0
    %285 = vmatpush1.msra.mxu0 0.0
    %286 = vmatprep.subr.mxu0 0.0
    %287 = vmatpush1.msra.mxu0 0.0
    %288 = vmatprep.subr.mxu0 0.0
    %289 = vmatpush1.msra.mxu0 0.0
    %290 = vmatprep.subr.mxu0 0.0
    %291 = vmatpush1.msra.mxu0 0.0
    %292 = vmatprep.subr.mxu0 0.0
    %293 = vmatpush1.msra.mxu0 0.0
    %294 = vmatprep.subr.mxu0 0.0
    %295 = vmatpush1.msra.mxu0 0.0
    %296 = vmatprep.subr.mxu0 0.0
    %297 = vmatpush1.msra.mxu0 0.0
    %298 = vmatprep.mubr.f32.mxu0 0.0
    %299 = vmatmul.mubr.f32.gmra.mrb[0].mxu0 %v232
    %v300 = vpop.f32.mrb[0].mxu0
    %v301 = vadd.f32 0.0, %v300
    %v302 = vpop.f32.mrb[0].mxu0
    %303 = vdwg.mxu0
    %v304 = vadd.f32 %v151, %v301
    %v305 = vtanh.pop %v304
    %v306 = vmul.f32 %v305, 0.0
    %308 = vrot.lane.b32.xlu0 %v305, 64
    %v309 = vpop.permute.xlu0 %308
    %v311 = vmul.f32 %v305, %v309
    %313 = vrot.lane.b32.xlu0 %v311, 96
    %v314 = vpop.permute.xlu0 %313
    %v316 = vadd.f32 %v306, %v314
    %v317 = vtanh.pop %v316
    %319 = vrot.lane.b32.xlu0 %v317, 64
    %v320 = vpop.permute.xlu0 %319
    %v322 = vmul.f32 %v305, %v320
    %s323 = scalar_lea.vmem [#allocation5], 32
    %v324 = vld [vmem:[%s323] sm:$0xff]
    %v325 = vld [vmem:[%s323 + $0x8] sm:$0xff]
    %v326 = vld [vmem:[%s323 + $0x10] sm:$0xff]
    %v327 = vld [vmem:[%s323 + $0x18] sm:$0xff]
    %329 = vrot.lane.b32.xlu0 %v322, 64
    %v330 = vpop.permute.xlu0 %329
    %v331 = vsel %vm230, %v330, 0
    %333 = vmatprep.subr.mxu0 0.0
    %334 = vmatpush1.msra.mxu0 %v324
    %335 = vmatprep.subr.mxu0 0.0
    %336 = vmatpush1.msra.mxu0 %v325
    %337 = vmatprep.subr.mxu0 0.0
    %338 = vmatpush1.msra.mxu0 %v326
    %339 = vmatprep.subr.mxu0 0.0
    %340 = vmatpush1.msra.mxu0 %v327
    %341 = vmatprep.subr.mxu0 0.0
    %342 = vmatpush1.msra.mxu0 0.0
    %343 = vmatprep.subr.mxu0 0.0
    %344 = vmatpush1.msra.mxu0 0.0
    %345 = vmatprep.subr.mxu0 0.0
    %346 = vmatpush1.msra.mxu0 0.0
    %347 = vmatprep.subr.mxu0 0.0
    %348 = vmatpush1.msra.mxu0 0.0
    %349 = vmatprep.subr.mxu0 0.0
    %350 = vmatpush1.msra.mxu0 0.0
    %351 = vmatprep.subr.mxu0 0.0
    %352 = vmatpush1.msra.mxu0 0.0
    %353 = vmatprep.subr.mxu0 0.0
    %354 = vmatpush1.msra.mxu0 0.0
    %355 = vmatprep.subr.mxu0 0.0
    %356 = vmatpush1.msra.mxu0 0.0
    %357 = vmatprep.subr.mxu0 0.0
    %358 = vmatpush1.msra.mxu0 0.0
    %359 = vmatprep.subr.mxu0 0.0
    %360 = vmatpush1.msra.mxu0 0.0
    %361 = vmatprep.subr.mxu0 0.0
    %362 = vmatpush1.msra.mxu0 0.0
    %363 = vmatprep.subr.mxu0 0.0
    %364 = vmatpush1.msra.mxu0 0.0
    %365 = vmatprep.subr.mxu0 0.0
    %366 = vmatpush1.msra.mxu0 0.0
    %367 = vmatprep.subr.mxu0 0.0
    %368 = vmatpush1.msra.mxu0 0.0
    %369 = vmatprep.subr.mxu0 0.0
    %370 = vmatpush1.msra.mxu0 0.0
    %371 = vmatprep.subr.mxu0 0.0
    %372 = vmatpush1.msra.mxu0 0.0
    %373 = vmatprep.subr.mxu0 0.0
    %374 = vmatpush1.msra.mxu0 0.0
    %375 = vmatprep.subr.mxu0 0.0
    %376 = vmatpush1.msra.mxu0 0.0
    %377 = vmatprep.subr.mxu0 0.0
    %378 = vmatpush1.msra.mxu0 0.0
    %379 = vmatprep.subr.mxu0 0.0
    %380 = vmatpush1.msra.mxu0 0.0
    %381 = vmatprep.subr.mxu0 0.0
    %382 = vmatpush1.msra.mxu0 0.0
    %383 = vmatprep.subr.mxu0 0.0
    %384 = vmatpush1.msra.mxu0 0.0
    %385 = vmatprep.subr.mxu0 0.0
    %386 = vmatpush1.msra.mxu0 0.0
    %387 = vmatprep.subr.mxu0 0.0
    %388 = vmatpush1.msra.mxu0 0.0
    %389 = vmatprep.subr.mxu0 0.0
    %390 = vmatpush1.msra.mxu0 0.0
    %391 = vmatprep.subr.mxu0 0.0
    %392 = vmatpush1.msra.mxu0 0.0
    %393 = vmatprep.subr.mxu0 0.0
    %394 = vmatpush1.msra.mxu0 0.0
    %395 = vmatprep.subr.mxu0 0.0
    %396 = vmatpush1.msra.mxu0 0.0
    %397 = vmatprep.mubr.f32.mxu0 0.0
    %398 = vmatmul.mubr.f32.gmra.mrb[0].mxu0 %v331
    %v399 = vpop.f32.mrb[0].mxu0
    %v400 = vadd.f32 0.0, %v399
    %v401 = vpop.f32.mrb[0].mxu0
    %402 = vdwg.mxu0
    %v403 = vadd.f32 %v153, %v400
    %v404 = vtanh.pop %v403
    %v405 = vmul.f32 %v404, %v316
    %407 = vrot.lane.b32.xlu0 %v404, 64
    %v408 = vpop.permute.xlu0 %407
    %v410 = vmul.f32 %v404, %v408
    %412 = vrot.lane.b32.xlu0 %v410, 96
    %v413 = vpop.permute.xlu0 %412
    %v415 = vadd.f32 %v405, %v413
    %v416 = vtanh.pop %v415
    %418 = vrot.lane.b32.xlu0 %v416, 64
    %v419 = vpop.permute.xlu0 %418
    %v421 = vmul.f32 %v404, %v419
    %s422 = scalar_lea.vmem [#allocation5], 64
    %v423 = vld [vmem:[%s422] sm:$0xff]
    %v424 = vld [vmem:[%s422 + $0x8] sm:$0xff]
    %v425 = vld [vmem:[%s422 + $0x10] sm:$0xff]
    %v426 = vld [vmem:[%s422 + $0x18] sm:$0xff]
    %428 = vrot.lane.b32.xlu0 %v421, 64
    %v429 = vpop.permute.xlu0 %428
    %v430 = vsel %vm230, %v429, 0
    %432 = vmatprep.subr.mxu0 0.0
    %433 = vmatpush1.msra.mxu0 %v423
    %434 = vmatprep.subr.mxu0 0.0
    %435 = vmatpush1.msra.mxu0 %v424
    %436 = vmatprep.subr.mxu0 0.0
    %437 = vmatpush1.msra.mxu0 %v425
    %438 = vmatprep.subr.mxu0 0.0
    %439 = vmatpush1.msra.mxu0 %v426
    %440 = vmatprep.subr.mxu0 0.0
    %441 = vmatpush1.msra.mxu0 0.0
    %442 = vmatprep.subr.mxu0 0.0
    %443 = vmatpush1.msra.mxu0 0.0
    %444 = vmatprep.subr.mxu0 0.0
    %445 = vmatpush1.msra.mxu0 0.0
    %446 = vmatprep.subr.mxu0 0.0
    %447 = vmatpush1.msra.mxu0 0.0
    %448 = vmatprep.subr.mxu0 0.0
    %449 = vmatpush1.msra.mxu0 0.0
    %450 = vmatprep.subr.mxu0 0.0
    %451 = vmatpush1.msra.mxu0 0.0
    %452 = vmatprep.subr.mxu0 0.0
    %453 = vmatpush1.msra.mxu0 0.0
    %454 = vmatprep.subr.mxu0 0.0
    %455 = vmatpush1.msra.mxu0 0.0
    %456 = vmatprep.subr.mxu0 0.0
    %457 = vmatpush1.msra.mxu0 0.0
    %458 = vmatprep.subr.mxu0 0.0
    %459 = vmatpush1.msra.mxu0 0.0
    %460 = vmatprep.subr.mxu0 0.0
    %461 = vmatpush1.msra.mxu0 0.0
    %462 = vmatprep.subr.mxu0 0.0
    %463 = vmatpush1.msra.mxu0 0.0
    %464 = vmatprep.subr.mxu0 0.0
    %465 = vmatpush1.msra.mxu0 0.0
    %466 = vmatprep.subr.mxu0 0.0
    %467 = vmatpush1.msra.mxu0 0.0
    %468 = vmatprep.subr.mxu0 0.0
    %469 = vmatpush1.msra.mxu0 0.0
    %470 = vmatprep.subr.mxu0 0.0
    %471 = vmatpush1.msra.mxu0 0.0
    %472 = vmatprep.subr.mxu0 0.0
    %473 = vmatpush1.msra.mxu0 0.0
    %474 = vmatprep.subr.mxu0 0.0
    %475 = vmatpush1.msra.mxu0 0.0
    %476 = vmatprep.subr.mxu0 0.0
    %477 = vmatpush1.msra.mxu0 0.0
    %478 = vmatprep.subr.mxu0 0.0
    %479 = vmatpush1.msra.mxu0 0.0
    %480 = vmatprep.subr.mxu0 0.0
    %481 = vmatpush1.msra.mxu0 0.0
    %482 = vmatprep.subr.mxu0 0.0
    %483 = vmatpush1.msra.mxu0 0.0
    %484 = vmatprep.subr.mxu0 0.0
    %485 = vmatpush1.msra.mxu0 0.0
    %486 = vmatprep.subr.mxu0 0.0
    %487 = vmatpush1.msra.mxu0 0.0
    %488 = vmatprep.subr.mxu0 0.0
    %489 = vmatpush1.msra.mxu0 0.0
    %490 = vmatprep.subr.mxu0 0.0
    %491 = vmatpush1.msra.mxu0 0.0
    %492 = vmatprep.subr.mxu0 0.0
    %493 = vmatpush1.msra.mxu0 0.0
    %494 = vmatprep.subr.mxu0 0.0
    %495 = vmatpush1.msra.mxu0 0.0
    %496 = vmatprep.mubr.f32.mxu0 0.0
    %497 = vmatmul.mubr.f32.gmra.mrb[0].mxu0 %v430
    %v498 = vpop.f32.mrb[0].mxu0
    %v499 = vadd.f32 0.0, %v498
    %v500 = vpop.f32.mrb[0].mxu0
    %501 = vdwg.mxu0
    %v502 = vadd.f32 %v222, %v499
    %v503 = vtanh.pop %v502
    %v504 = vmul.f32 %v503, %v415
    %506 = vrot.lane.b32.xlu0 %v503, 64
    %v507 = vpop.permute.xlu0 %506
    %v509 = vmul.f32 %v503, %v507
    %511 = vrot.lane.b32.xlu0 %v509, 96
    %v512 = vpop.permute.xlu0 %511
    %v514 = vadd.f32 %v504, %v512
    %v515 = vtanh.pop %v514
    %517 = vrot.lane.b32.xlu0 %v515, 64
    %v518 = vpop.permute.xlu0 %517
    %v520 = vmul.f32 %v503, %v518
    %s521 = scalar_lea.vmem [#allocation5], 96
    %v522 = vld [vmem:[%s521] sm:$0xff]
    %v523 = vld [vmem:[%s521 + $0x8] sm:$0xff]
    %v524 = vld [vmem:[%s521 + $0x10] sm:$0xff]
    %v525 = vld [vmem:[%s521 + $0x18] sm:$0xff]
    %527 = vrot.lane.b32.xlu0 %v520, 64
    %v528 = vpop.permute.xlu0 %527
    %v529 = vsel %vm230, %v528, 0
    %531 = vmatprep.subr.mxu0 0.0
    %532 = vmatpush1.msra.mxu0 %v522
    %533 = vmatprep.subr.mxu0 0.0
    %534 = vmatpush1.msra.mxu0 %v523
    %535 = vmatprep.subr.mxu0 0.0
    %536 = vmatpush1.msra.mxu0 %v524
    %537 = vmatprep.subr.mxu0 0.0
    %538 = vmatpush1.msra.mxu0 %v525
    %539 = vmatprep.subr.mxu0 0.0
    %540 = vmatpush1.msra.mxu0 0.0
    %541 = vmatprep.subr.mxu0 0.0
    %542 = vmatpush1.msra.mxu0 0.0
    %543 = vmatprep.subr.mxu0 0.0
    %544 = vmatpush1.msra.mxu0 0.0
    %545 = vmatprep.subr.mxu0 0.0
    %546 = vmatpush1.msra.mxu0 0.0
    %547 = vmatprep.subr.mxu0 0.0
    %548 = vmatpush1.msra.mxu0 0.0
    %549 = vmatprep.subr.mxu0 0.0
    %550 = vmatpush1.msra.mxu0 0.0
    %551 = vmatprep.subr.mxu0 0.0
    %552 = vmatpush1.msra.mxu0 0.0
    %553 = vmatprep.subr.mxu0 0.0
    %554 = vmatpush1.msra.mxu0 0.0
    %555 = vmatprep.subr.mxu0 0.0
    %556 = vmatpush1.msra.mxu0 0.0
    %557 = vmatprep.subr.mxu0 0.0
    %558 = vmatpush1.msra.mxu0 0.0
    %559 = vmatprep.subr.mxu0 0.0
    %560 = vmatpush1.msra.mxu0 0.0
    %561 = vmatprep.subr.mxu0 0.0
    %562 = vmatpush1.msra.mxu0 0.0
    %563 = vmatprep.subr.mxu0 0.0
    %564 = vmatpush1.msra.mxu0 0.0
    %565 = vmatprep.subr.mxu0 0.0
    %566 = vmatpush1.msra.mxu0 0.0
    %567 = vmatprep.subr.mxu0 0.0
    %568 = vmatpush1.msra.mxu0 0.0
    %569 = vmatprep.subr.mxu0 0.0
    %570 = vmatpush1.msra.mxu0 0.0
    %571 = vmatprep.subr.mxu0 0.0
    %572 = vmatpush1.msra.mxu0 0.0
    %573 = vmatprep.subr.mxu0 0.0
    %574 = vmatpush1.msra.mxu0 0.0
    %575 = vmatprep.subr.mxu0 0.0
    %576 = vmatpush1.msra.mxu0 0.0
    %577 = vmatprep.subr.mxu0 0.0
    %578 = vmatpush1.msra.mxu0 0.0
    %579 = vmatprep.subr.mxu0 0.0
    %580 = vmatpush1.msra.mxu0 0.0
    %581 = vmatprep.subr.mxu0 0.0
    %582 = vmatpush1.msra.mxu0 0.0
    %583 = vmatprep.subr.mxu0 0.0
    %584 = vmatpush1.msra.mxu0 0.0
    %585 = vmatprep.subr.mxu0 0.0
    %586 = vmatpush1.msra.mxu0 0.0
    %587 = vmatprep.subr.mxu0 0.0
    %588 = vmatpush1.msra.mxu0 0.0
    %589 = vmatprep.subr.mxu0 0.0
    %590 = vmatpush1.msra.mxu0 0.0
    %591 = vmatprep.subr.mxu0 0.0
    %592 = vmatpush1.msra.mxu0 0.0
    %593 = vmatprep.subr.mxu0 0.0
    %594 = vmatpush1.msra.mxu0 0.0
    %595 = vmatprep.mubr.f32.mxu0 0.0
    %596 = vmatmul.mubr.f32.gmra.mrb[0].mxu0 %v529
    %v597 = vpop.f32.mrb[0].mxu0
    %v598 = vadd.f32 0.0, %v597
    %v599 = vpop.f32.mrb[0].mxu0
    %600 = vdwg.mxu0
    %v601 = vadd.f32 %v224, %v598
    %v602 = vtanh.pop %v601
    %v603 = vmul.f32 %v602, %v514
    %605 = vrot.lane.b32.xlu0 %v602, 64
    %v606 = vpop.permute.xlu0 %605
    %v608 = vmul.f32 %v602, %v606
    %610 = vrot.lane.b32.xlu0 %v608, 96
    %v611 = vpop.permute.xlu0 %610
    %v613 = vadd.f32 %v603, %v611
    %v614 = vtanh.pop %v613
    %616 = vrot.lane.b32.xlu0 %v614, 64
    %v617 = vpop.permute.xlu0 %616
    %v619 = vmul.f32 %v602, %v617
    %v620 = vld [vmem:[%s4] sm:$0xff]
    %v621 = vld [vmem:[%s4 + $0x8] sm:$0xff]
    %v622 = vld [vmem:[%s4 + $0x10] sm:$0xff]
    %v623 = vld [vmem:[%s4 + $0x18] sm:$0xff]
    %625 = vrot.lane.b32.xlu0 %v619, 64
    %v626 = vpop.permute.xlu0 %625
    %v627 = vsel %vm230, %v626, 0
    %629 = vmatprep.subr.mxu0 0.0
    %630 = vmatpush1.msra.mxu0 %v620
    %631 = vmatprep.subr.mxu0 0.0
    %632 = vmatpush1.msra.mxu0 %v621
    %633 = vmatprep.subr.mxu0 0.0
    %634 = vmatpush1.msra.mxu0 %v622
    %635 = vmatprep.subr.mxu0 0.0
    %636 = vmatpush1.msra.mxu0 %v623
    %637 = vmatprep.subr.mxu0 0.0
    %638 = vmatpush1.msra.mxu0 0.0
    %639 = vmatprep.subr.mxu0 0.0
    %640 = vmatpush1.msra.mxu0 0.0
    %641 = vmatprep.subr.mxu0 0.0
    %642 = vmatpush1.msra.mxu0 0.0
    %643 = vmatprep.subr.mxu0 0.0
    %644 = vmatpush1.msra.mxu0 0.0
    %645 = vmatprep.subr.mxu0 0.0
    %646 = vmatpush1.msra.mxu0 0.0
    %647 = vmatprep.subr.mxu0 0.0
    %648 = vmatpush1.msra.mxu0 0.0
    %649 = vmatprep.subr.mxu0 0.0
    %650 = vmatpush1.msra.mxu0 0.0
    %651 = vmatprep.subr.mxu0 0.0
    %652 = vmatpush1.msra.mxu0 0.0
    %653 = vmatprep.subr.mxu0 0.0
    %654 = vmatpush1.msra.mxu0 0.0
    %655 = vmatprep.subr.mxu0 0.0
    %656 = vmatpush1.msra.mxu0 0.0
    %657 = vmatprep.subr.mxu0 0.0
    %658 = vmatpush1.msra.mxu0 0.0
    %659 = vmatprep.subr.mxu0 0.0
    %660 = vmatpush1.msra.mxu0 0.0
    %661 = vmatprep.subr.mxu0 0.0
    %662 = vmatpush1.msra.mxu0 0.0
    %663 = vmatprep.subr.mxu0 0.0
    %664 = vmatpush1.msra.mxu0 0.0
    %665 = vmatprep.subr.mxu0 0.0
    %666 = vmatpush1.msra.mxu0 0.0
    %667 = vmatprep.subr.mxu0 0.0
    %668 = vmatpush1.msra.mxu0 0.0
    %669 = vmatprep.subr.mxu0 0.0
    %670 = vmatpush1.msra.mxu0 0.0
    %671 = vmatprep.subr.mxu0 0.0
    %672 = vmatpush1.msra.mxu0 0.0
    %673 = vmatprep.subr.mxu0 0.0
    %674 = vmatpush1.msra.mxu0 0.0
    %675 = vmatprep.subr.mxu0 0.0
    %676 = vmatpush1.msra.mxu0 0.0
    %677 = vmatprep.subr.mxu0 0.0
    %678 = vmatpush1.msra.mxu0 0.0
    %679 = vmatprep.subr.mxu0 0.0
    %680 = vmatpush1.msra.mxu0 0.0
    %681 = vmatprep.subr.mxu0 0.0
    %682 = vmatpush1.msra.mxu0 0.0
    %683 = vmatprep.subr.mxu0 0.0
    %684 = vmatpush1.msra.mxu0 0.0
    %685 = vmatprep.subr.mxu0 0.0
    %686 = vmatpush1.msra.mxu0 0.0
    %687 = vmatprep.subr.mxu0 0.0
    %688 = vmatpush1.msra.mxu0 0.0
    %689 = vmatprep.subr.mxu0 0.0
    %690 = vmatpush1.msra.mxu0 0.0
    %691 = vmatprep.subr.mxu0 0.0
    %692 = vmatpush1.msra.mxu0 0.0
    %693 = vmatprep.mubr.f32.mxu0 0.0
    %694 = vmatmul.mubr.f32.gmra.mrb[0].mxu0 %v627
    %v695 = vpop.f32.mrb[0].mxu0
    %v696 = vadd.f32 0.0, %v695
    %v697 = vpop.f32.mrb[0].mxu0
    %698 = vdwg.mxu0
    %699 = vst.msk [vmem:[#allocation7] sm:$0xff] %vm80, %v696
    // Predicated region
    $region30: #{tpu_custom_call.1} parent=1 // pred_check
      _
    $region31: #{tpu_custom_call.1} parent=1 // pred_check_branch
      %701 = sbr.rel (0) target = $region33
    $region32: #{tpu_custom_call.1} parent=1 // pred_region
      %s703 = ssub.s32 128, 128
      %704 = vsyncadd [#allocation4], %s703
      %s706 = sshll.u32 [#allocation7], 4
      %s707 = int_to_ptr.vmem [resolvable:$true] %s706
      %709 = dma.vmem_to_hbm [thread:$0]  %s707, 128, %s5, [#allocation4]
    $region33: #{tpu_custom_call.1} parent=1 // pred_fallthru
      _
    // Predicated region
    $region34: #{tpu_custom_call.1} parent=1 // pred_check
      _
    $region35: #{tpu_custom_call.1} parent=1 // pred_check_branch
      %711 = sbr.rel (0) target = $region37
    $region36: #{tpu_custom_call.1} parent=1 // pred_region
      %712 = dma.done [#allocation4], 128
    $region37: #{tpu_custom_call.1} parent=1 // pred_fallthru
      _
    %713 = vsyncpa [#allocation3], 1
    %714 = vsyncpa [#allocation6], 1
    %715 = vsyncpa [#allocation4], 1

</llo_original>
